<compile_context>
chip_gen: v7x
topology: tpu7x:2x2x1
jax: 0.10.0
libtpu: 0.0.40
codegen_flags: <defaults>
</compile_context>

<pallas_src>
import functools

import jax
import jax.numpy as jnp
from jax.experimental import pallas as pl
from jax.experimental.pallas import tpu as pltpu


def _round_up(x, m):
    return ((x + m - 1) // m) * m


def _fused_mlp_kernel(*refs, n_layers):
    """Whole MLP for one batch row-tile; activation stays in vregs between layers.

    refs layout: (x_ref, w0_ref, b0_ref, ..., w_last_ref, b_last_ref, out_ref).
    x_ref:      (B_TILE, D_in_pad)  bf16   (streamed per grid step)
    hidden W:   (D_in_pad, D_out_pad) bf16 (resident, constant index_map)
    hidden b:   (1, D_out_pad)       f32
    last W:     (8, D_pad)           bf16  (row 0 = real weights, rows 1..7 = 0)
    last b:     (1, 1)               f32   (SMEM scalar)
    out_ref:    (8, B_TILE)          f32   (lane-dense; row 0 is the real output)
    """
    x_ref = refs[0]
    out_ref = refs[-1]

    h = x_ref[...]                                   # bf16, stays in vregs
    for k in range(n_layers - 1):
        w_ref = refs[1 + 2 * k]
        b_ref = refs[2 + 2 * k]
        z = jnp.dot(h, w_ref[...], preferred_element_type=jnp.float32)  # MXU, f32 acc
        z = z + b_ref[...]                           # f32 bias add (sublane broadcast)
        z = jnp.maximum(z, 0.0)                      # ReLU in f32
        # F.dropout(training=False) is identity -> nothing to do.
        h = z.astype(jnp.bfloat16)                   # back to bf16 for next MXU pass

    w_last_ref = refs[1 + 2 * (n_layers - 1)]        # (8, D_pad) bf16
    b_last_ref = refs[2 + 2 * (n_layers - 1)]        # (1, 1) f32 in SMEM
    # y[r, b] = sum_d W_last[r, d] * h[b, d]  -> lane-dense (8, B_TILE); row 0 real.
    y = jax.lax.dot_general(
        w_last_ref[...], h,
        dimension_numbers=(((1,), (1,)), ((), ())),
        preferred_element_type=jnp.float32)
    out_ref[...] = (y + b_last_ref[0, 0]).astype(out_ref.dtype)


def init_mlp_readout_params(key, n_out_feature, d_FC_layer, n_FC_layer,
                            dtype=jnp.float32):
    """Deterministic params matching nn.Linear shapes (weights stored [in, out])."""
    params = []
    for i in range(n_FC_layer):
        if i == 0:
            d_in, d_out = n_out_feature, d_FC_layer
        elif i == n_FC_layer - 1:
            d_in, d_out = d_FC_layer, 1
        else:
            d_in, d_out = d_FC_layer, d_FC_layer
        key, kw, kb = jax.random.split(key, 3)
        bound = 1.0 / (d_in ** 0.5)  # same bound nn.Linear uses
        w = jax.random.uniform(kw, (d_in, d_out), dtype, -bound, bound)
        b = jax.random.uniform(kb, (d_out,), dtype, -bound, bound)
        params.append((w, b))
    return params


def prepare_padded_params(params):
    """Pad every layer to 128-lane multiples; hidden W in bf16, biases in f32.

    Zero padding is exact (padded rows/cols contribute 0).  The final layer
    (d_out == 1) is stored as a lane-dense (8, D_pad) bf16 block (row 0 real)
    plus a (1, 1) f32 scalar bias, so the kernel can emit a lane-dense output
    row-tile instead of a [B, 128] slab.
    """
    n = len(params)
    padded = []
    in_pad = _round_up(params[0][0].shape[0], 128)
    for i, (w, b) in enumerate(params):
        d_in, d_out = w.shape
        if i < n - 1:
            out_pad = _round_up(d_out, 128)
            w_p = (jnp.zeros((in_pad, out_pad), jnp.bfloat16)
                   .at[:d_in, :d_out].set(w.astype(jnp.bfloat16)))
            b_p = (jnp.zeros((1, out_pad), jnp.float32)
                   .at[0, :d_out].set(b.astype(jnp.float32)))
            in_pad = out_pad
        else:
            assert d_out == 1, "MLPReadout final layer must have d_out == 1"
            w_p = (jnp.zeros((8, in_pad), jnp.bfloat16)
                   .at[0, :d_in].set(w[:, 0].astype(jnp.bfloat16)))
            b_p = b.astype(jnp.float32).reshape(1, 1)
        padded.append((w_p, b_p))
    return padded


def mlp_readout_forward(padded_params, c_hs, *, b_tile=512):
    """c_hs: [B, D_in] (unpadded). Returns [B, 1]."""
    B, D_in = c_hs.shape
    D_in_pad = _round_up(D_in, 128)
    n_layers = len(padded_params)

    # Row-tile selection: multiple of 16 sublanes (bf16 packing); 512 is a
    # multiple of both 128 (v5e MXU) and 256 (v6e/v7x MXU).
    if B <= b_tile:
        B_TILE = _round_up(max(B, 1), 16)
        B_pad = B_TILE
    else:
        B_TILE = b_tile
        B_pad = _round_up(B, B_TILE)
    n_tiles = B_pad // B_TILE

    # Lane/sublane-dense bf16 input slab (padded rows/cols are zero -> exact).
    x_pad = (jnp.zeros((B_pad, D_in_pad), jnp.bfloat16)
             .at[:B, :D_in].set(c_hs.astype(jnp.bfloat16)))

    in_specs = [pl.BlockSpec((B_TILE, D_in_pad), lambda i: (i, 0))]  # streamed
    flat_inputs = [x_pad]
    flops = 0
    bytes_accessed = x_pad.size * x_pad.dtype.itemsize
    for li, (w_p, b_p) in enumerate(padded_params):
        in_specs.append(pl.BlockSpec(w_p.shape, lambda i: (0, 0)))   # resident weights
        if li < n_layers - 1:
            in_specs.append(pl.BlockSpec(b_p.shape, lambda i: (0, 0)))
            flops += 2 * B_pad * w_p.shape[0] * w_p.shape[1]
        else:
            in_specs.append(pl.BlockSpec(memory_space=pltpu.MemorySpace.SMEM))
            flops += 2 * B_pad * w_p.shape[0] * w_p.shape[1]
        flat_inputs += [w_p, b_p]
        bytes_accessed += w_p.size * w_p.dtype.itemsize + b_p.size * b_p.dtype.itemsize
    bytes_accessed += 8 * B_pad * 4  # lane-dense f32 output rows

    kernel = functools.partial(_fused_mlp_kernel, n_layers=n_layers)

    out_rows = pl.pallas_call(
        kernel,
        out_shape=jax.ShapeDtypeStruct((8, B_pad), jnp.float32),
        grid=(n_tiles,),
        in_specs=in_specs,
        out_specs=pl.BlockSpec((8, B_TILE), lambda i: (0, i)),
        compiler_params=pltpu.CompilerParams(
            dimension_semantics=("parallel",)),
        cost_estimate=pl.CostEstimate(
            flops=flops, transcendentals=0, bytes_accessed=bytes_accessed),
    )(*flat_inputs)

    # Trivial lane-dense slice back to the true batch; [B] -> [B, 1].
    return out_rows[0, :B].reshape(B, 1).astype(c_hs.dtype)


if __name__ == "__main__":
    # Small config consistent with the module's __init__ args.
    n_out_feature = 32
    d_FC_layer = 64
    n_FC_layer = 3
    batch = 8

    key = jax.random.PRNGKey(0)
    key, kx = jax.random.split(key)
    x = jax.random.normal(kx, (batch, n_out_feature), jnp.float32)

    params = init_mlp_readout_params(key, n_out_feature, d_FC_layer, n_FC_layer)
    padded_params = prepare_padded_params(params)

    out = mlp_readout_forward(padded_params, x)
    out = jax.block_until_ready(out)
    assert out.shape == (batch, 1), out.shape

    # Reference 1: mimics the kernel's arithmetic (bf16 operands, f32 accumulate,
    # f32 bias/ReLU) -> validates padding / tiling / fusion plumbing tightly.
    ref_mixed = x
    for k, (w, b) in enumerate(params):
        z = jnp.dot(ref_mixed.astype(jnp.bfloat16), w.astype(jnp.bfloat16),
                    preferred_element_type=jnp.float32) + b.astype(jnp.float32)
        ref_mixed = jnp.maximum(z, 0.0) if k < n_FC_layer - 1 else z
    assert jnp.allclose(out, ref_mixed, atol=1e-3, rtol=1e-3), (
        float(jnp.max(jnp.abs(out - ref_mixed))))

    # Reference 2: the original full-f32 module semantics (loose tolerance
    # because the kernel intentionally uses bf16 MXU operands).
    ref_f32 = x
    for k, (w, b) in enumerate(params):
        ref_f32 = ref_f32 @ w + b
        if k < n_FC_layer - 1:
            ref_f32 = jnp.maximum(ref_f32, 0.0)
    assert jnp.allclose(out, ref_f32, atol=1e-1, rtol=1e-1), (
        float(jnp.max(jnp.abs(out - ref_f32))))

    print("KERNEL_OK")
</pallas_src>

<mosaic_0001>
module attributes {stable_mosaic.version = 11 : i64} {
  func.func @_fused_mlp_kernel(%arg0: i32, %arg1: memref<16x128xbf16, #tpu.memory_space<vmem>>, %arg2: memref<128x128xbf16, #tpu.memory_space<vmem>>, %arg3: memref<1x128xf32, #tpu.memory_space<vmem>>, %arg4: memref<128x128xbf16, #tpu.memory_space<vmem>>, %arg5: memref<1x128xf32, #tpu.memory_space<vmem>>, %arg6: memref<8x128xbf16, #tpu.memory_space<vmem>>, %arg7: memref<1x1xf32, #tpu.memory_space<smem>>, %arg8: memref<8x16xf32, #tpu.memory_space<vmem>>) attributes {dimension_semantics = [#tpu.dimension_semantics<parallel>], iteration_bounds = array<i64: 1>, scalar_prefetch = 0 : i64, scratch_operands = 0 : i64, tpu.core_type = #tpu.core_type<tc>, window_params = [{transform_indices = @transform_0, window_bounds = array<i64: 16, 128>}, {pipeline_mode = #tpu.pipeline_mode<synchronous>, transform_indices = @transform_1, window_bounds = array<i64: 128, 128>}, {pipeline_mode = #tpu.pipeline_mode<synchronous>, transform_indices = @transform_2, window_bounds = array<i64: 1, 128>}, {pipeline_mode = #tpu.pipeline_mode<synchronous>, transform_indices = @transform_3, window_bounds = array<i64: 128, 128>}, {pipeline_mode = #tpu.pipeline_mode<synchronous>, transform_indices = @transform_4, window_bounds = array<i64: 1, 128>}, {pipeline_mode = #tpu.pipeline_mode<synchronous>, transform_indices = @transform_5, window_bounds = array<i64: 8, 128>}, {transform_indices = @transform_6, window_bounds = array<i64: 1, 1>}, {transform_indices = @transform_7, window_bounds = array<i64: 8, 16>}]} {
    %c0 = arith.constant 0 : index
    %c0_0 = arith.constant 0 : index
    %0 = vector.load %arg1[%c0, %c0_0] : memref<16x128xbf16, #tpu.memory_space<vmem>>, vector<16x128xbf16>
    %c0_1 = arith.constant 0 : index
    %c0_2 = arith.constant 0 : index
    %1 = vector.load %arg2[%c0_1, %c0_2] : memref<128x128xbf16, #tpu.memory_space<vmem>>, vector<128x128xbf16>
    %cst = arith.constant dense<0.000000e+00> : vector<16x128xf32>
    %2 = tpu.matmul %0, %1, %cst {dimension_numbers = #tpu.dot_dimension_numbers<[1], [0], [0], [1], [0, 0, 1, 1], [], []>} : vector<16x128xbf16>, vector<128x128xbf16>, vector<16x128xf32> -> vector<16x128xf32>
    %c0_3 = arith.constant 0 : index
    %c0_4 = arith.constant 0 : index
    %3 = vector.load %arg3[%c0_3, %c0_4] : memref<1x128xf32, #tpu.memory_space<vmem>>, vector<1x128xf32>
    %4 = vector.broadcast %3 : vector<1x128xf32> to vector<16x128xf32>
    %5 = arith.addf %2, %4 : vector<16x128xf32>
    %cst_5 = arith.constant 0.000000e+00 : f32
    %6 = vector.broadcast %cst_5 : f32 to vector<16x128xf32>
    %7 = arith.maximumf %5, %6 : vector<16x128xf32>
    %8 = arith.truncf %7 : vector<16x128xf32> to vector<16x128xbf16>
    %c0_6 = arith.constant 0 : index
    %c0_7 = arith.constant 0 : index
    %9 = vector.load %arg4[%c0_6, %c0_7] : memref<128x128xbf16, #tpu.memory_space<vmem>>, vector<128x128xbf16>
    %cst_8 = arith.constant dense<0.000000e+00> : vector<16x128xf32>
    %10 = tpu.matmul %8, %9, %cst_8 {dimension_numbers = #tpu.dot_dimension_numbers<[1], [0], [0], [1], [0, 0, 1, 1], [], []>} : vector<16x128xbf16>, vector<128x128xbf16>, vector<16x128xf32> -> vector<16x128xf32>
    %c0_9 = arith.constant 0 : index
    %c0_10 = arith.constant 0 : index
    %11 = vector.load %arg5[%c0_9, %c0_10] : memref<1x128xf32, #tpu.memory_space<vmem>>, vector<1x128xf32>
    %12 = vector.broadcast %11 : vector<1x128xf32> to vector<16x128xf32>
    %13 = arith.addf %10, %12 : vector<16x128xf32>
    %cst_11 = arith.constant 0.000000e+00 : f32
    %14 = vector.broadcast %cst_11 : f32 to vector<16x128xf32>
    %15 = arith.maximumf %13, %14 : vector<16x128xf32>
    %16 = arith.truncf %15 : vector<16x128xf32> to vector<16x128xbf16>
    %c0_12 = arith.constant 0 : index
    %c0_13 = arith.constant 0 : index
    %17 = vector.load %arg6[%c0_12, %c0_13] : memref<8x128xbf16, #tpu.memory_space<vmem>>, vector<8x128xbf16>
    %cst_14 = arith.constant dense<0.000000e+00> : vector<8x16xf32>
    %18 = tpu.matmul %17, %16, %cst_14 {dimension_numbers = #tpu.dot_dimension_numbers<[1], [1], [0], [0], [0, 0, 1, 0], [], []>} : vector<8x128xbf16>, vector<16x128xbf16>, vector<8x16xf32> -> vector<8x16xf32>
    %c0_15 = arith.constant 0 : index
    %c0_16 = arith.constant 0 : index
    %19 = memref.load %arg7[%c0_15, %c0_16] : memref<1x1xf32, #tpu.memory_space<smem>>
    %20 = vector.broadcast %19 : f32 to vector<8x16xf32>
    %21 = arith.addf %18, %20 : vector<8x16xf32>
    %c0_17 = arith.constant 0 : index
    %c0_18 = arith.constant 0 : index
    %22 = vector.load %arg8[%c0_17, %c0_18] : memref<8x16xf32, #tpu.memory_space<vmem>>, vector<8x16xf32>
    tpu.vector_store %arg8[%c0_17, %c0_18], %21 {strides = array<i32>} : memref<8x16xf32, #tpu.memory_space<vmem>>, vector<8x16xf32>,
    return
  }
  func.func @transform_0(%arg0: i32) -> (i32, i32) {
    %c0_i32 = arith.constant 0 : i32
    %c0_i32_0 = arith.constant 0 : i32
    return %arg0, %c0_i32 : i32, i32
  }
  func.func @transform_1(%arg0: i32) -> (i32, i32) {
    %c0_i32 = arith.constant 0 : i32
    %c0_i32_0 = arith.constant 0 : i32
    %c0_i32_1 = arith.constant 0 : i32
    return %c0_i32, %c0_i32_0 : i32, i32
  }
  func.func @transform_2(%arg0: i32) -> (i32, i32) {
    %c0_i32 = arith.constant 0 : i32
    %c0_i32_0 = arith.constant 0 : i32
    %c0_i32_1 = arith.constant 0 : i32
    return %c0_i32, %c0_i32_0 : i32, i32
  }
  func.func @transform_3(%arg0: i32) -> (i32, i32) {
    %c0_i32 = arith.constant 0 : i32
    %c0_i32_0 = arith.constant 0 : i32
    %c0_i32_1 = arith.constant 0 : i32
    return %c0_i32, %c0_i32_0 : i32, i32
  }
  func.func @transform_4(%arg0: i32) -> (i32, i32) {
    %c0_i32 = arith.constant 0 : i32
    %c0_i32_0 = arith.constant 0 : i32
    %c0_i32_1 = arith.constant 0 : i32
    return %c0_i32, %c0_i32_0 : i32, i32
  }
  func.func @transform_5(%arg0: i32) -> (i32, i32) {
    %c0_i32 = arith.constant 0 : i32
    %c0_i32_0 = arith.constant 0 : i32
    %c0_i32_1 = arith.constant 0 : i32
    return %c0_i32, %c0_i32_0 : i32, i32
  }
  func.func @transform_6(%arg0: i32) -> (i32, i32) {
    %c0_i32 = arith.constant 0 : i32
    %c0_i32_0 = arith.constant 0 : i32
    %c0_i32_1 = arith.constant 0 : i32
    return %c0_i32, %c0_i32_0 : i32, i32
  }
  func.func @transform_7(%arg0: i32) -> (i32, i32) {
    %c0_i32 = arith.constant 0 : i32
    %c0_i32_0 = arith.constant 0 : i32
    return %c0_i32, %arg0 : i32, i32
  }
}

</mosaic_0001>

<llo_original>
// kernel: tpu_custom_call.1
$region0: #{tpu_custom_call.1}
  #allocation0 [shape = 'u32[]', space=smem, size = 0x4, offset = 0x4, fixed_abs, tag = 'smem constant byte address 0x4 - core index']
  #allocation1 [shape = 'u32[144,128]{1,0:T(1,128)}', space=vmem, size = 0x12000, scoped, tag = 'internal scratch']
  #allocation2 [shape = 'f32[1,1]{1,0:T(1,128)S(6)}', space=smem, size = 0x200, scoped, tag = 'scoped memory for tpu_custom_call.1']
  %s0 = inlined_call_operand.hbm [shape: bf16[16,128], index: 0, kind: input, shape index: {}]
  %s1 = inlined_call_operand.hbm [shape: bf16[128,128], index: 1, kind: input, shape index: {}]
  %s2 = inlined_call_operand.vmem [shape: f32[1,128], index: 2, kind: input, shape index: {}]
  %s3 = inlined_call_operand.hbm [shape: bf16[128,128], index: 3, kind: input, shape index: {}]
  %s4 = inlined_call_operand.vmem [shape: f32[1,128], index: 4, kind: input, shape index: {}]
  %s5 = inlined_call_operand.vmem [shape: bf16[8,128], index: 5, kind: input, shape index: {}]
  %s6 = inlined_call_operand.<no memory space> [shape: f32[1,1], index: 6, kind: input, shape index: {}]
  %s7 = inlined_call_operand.hbm [shape: f32[8,16], index: 7, kind: output, shape index: {}]
  %s8 = sld [smem:[#allocation0]]
  $region50: #{tpu_custom_call.1} parent=0
    _
  %s10 = ssub.s32 1, %s8
  %s11 = scalar_select 0, %s10, %s8
  %12 = sst [smem:[#allocation2]] %s6
  $region1: #{tpu_custom_call.1} parent=0
    #allocation3 [shape = 'u8[4096]{0}', space=vmem, size = 0x1000, scoped, tag = 'input window, operand 0, single buffered']
    #allocation4 [shape = 's32[1]{0}', space=sflag, size = 0x4, scoped, tag = 'scoped memory for tpu_custom_call.1']
    #allocation5 [shape = 's32[1]{0}', space=sflag, size = 0x4, scoped, tag = 'scoped memory for tpu_custom_call.1']
    #allocation6 [shape = 'u8[32768]{0}', space=vmem, size = 0x8000, scoped, tag = 'input window, operand 1, single buffered']
    #allocation7 [shape = 's32[1]{0}', space=sflag, size = 0x4, scoped, tag = 'scoped memory for tpu_custom_call.1']
    #allocation8 [shape = 'u8[32768]{0}', space=vmem, size = 0x8000, scoped, tag = 'input window, operand 3, single buffered']
    #allocation9 [shape = 'u8[4096]{0}', space=vmem, size = 0x1000, scoped, tag = 'output window, operand 0, single buffered']
    %13 = vsyncpa [#allocation4], 0
    %14 = vsyncpa [#allocation7], 0
    %15 = vsyncpa [#allocation5], 0
    // Predicated region
    $region2: #{tpu_custom_call.1} parent=1 // pred_check
      _
    $region3: #{tpu_custom_call.1} parent=1 // pred_check_branch
      %17 = sbr.rel (0) target = $region5
    $region4: #{tpu_custom_call.1} parent=1 // pred_region
      %s19 = ssub.s32 128, 128
      %20 = vsyncadd [#allocation4], %s19
      %s21 = sshll.u32 [#allocation3], 4
      %s22 = int_to_ptr.vmem [resolvable:$true] %s21
      %27 = dma.hbm_to_vmem [thread:$0]  %s0, 128, %s22, [#allocation4], 64, 64, 4
    $region5: #{tpu_custom_call.1} parent=1 // pred_fallthru
      _
    // Predicated region
    $region6: #{tpu_custom_call.1} parent=1 // pred_check
      _
    $region7: #{tpu_custom_call.1} parent=1 // pred_check_branch
      %29 = sbr.rel (0) target = $region9
    $region8: #{tpu_custom_call.1} parent=1 // pred_region
      %s31 = ssub.s32 1024, 1024
      %32 = vsyncadd [#allocation7], %s31
      %s33 = sshll.u32 [#allocation6], 4
      %s34 = int_to_ptr.vmem [resolvable:$true] %s33
      %39 = dma.hbm_to_vmem [thread:$0]  %s1, 1024, %s34, [#allocation7], 64, 64, 4
    $region9: #{tpu_custom_call.1} parent=1 // pred_fallthru
      _
    // Predicated region
    $region10: #{tpu_custom_call.1} parent=1 // pred_check
      _
    $region11: #{tpu_custom_call.1} parent=1 // pred_check_branch
      %41 = sbr.rel (0) target = $region13
    $region12: #{tpu_custom_call.1} parent=1 // pred_region
      _
    $region13: #{tpu_custom_call.1} parent=1 // pred_fallthru
      _
    // Predicated region
    $region14: #{tpu_custom_call.1} parent=1 // pred_check
      _
    $region15: #{tpu_custom_call.1} parent=1 // pred_check_branch
      %43 = sbr.rel (0) target = $region17
    $region16: #{tpu_custom_call.1} parent=1 // pred_region
      %s45 = ssub.s32 1024, 1024
      %46 = vsyncadd [#allocation7], %s45
      %s47 = sshll.u32 [#allocation8], 4
      %s48 = int_to_ptr.vmem [resolvable:$true] %s47
      %53 = dma.hbm_to_vmem [thread:$0]  %s3, 1024, %s48, [#allocation7], 64, 64, 4
    $region17: #{tpu_custom_call.1} parent=1 // pred_fallthru
      _
    // Predicated region
    $region18: #{tpu_custom_call.1} parent=1 // pred_check
      _
    $region19: #{tpu_custom_call.1} parent=1 // pred_check_branch
      %55 = sbr.rel (0) target = $region21
    $region20: #{tpu_custom_call.1} parent=1 // pred_region
      _
    $region21: #{tpu_custom_call.1} parent=1 // pred_fallthru
      _
    // Predicated region
    $region22: #{tpu_custom_call.1} parent=1 // pred_check
      _
    $region23: #{tpu_custom_call.1} parent=1 // pred_check_branch
      %57 = sbr.rel (0) target = $region25
    $region24: #{tpu_custom_call.1} parent=1 // pred_region
      _
    $region25: #{tpu_custom_call.1} parent=1 // pred_fallthru
      _
    // Predicated region
    $region26: #{tpu_custom_call.1} parent=1 // pred_check
      _
    $region27: #{tpu_custom_call.1} parent=1 // pred_check_branch
      %59 = sbr.rel (0) target = $region29
    $region28: #{tpu_custom_call.1} parent=1 // pred_region
      _
    $region29: #{tpu_custom_call.1} parent=1 // pred_fallthru
      _
    // Predicated region
    $region30: #{tpu_custom_call.1} parent=1 // pred_check
      _
    $region31: #{tpu_custom_call.1} parent=1 // pred_check_branch
      %61 = sbr.rel (0) target = $region33
    $region32: #{tpu_custom_call.1} parent=1 // pred_region
      %62 = dma.done [#allocation4], 128
    $region33: #{tpu_custom_call.1} parent=1 // pred_fallthru
      _
    // Predicated region
    $region34: #{tpu_custom_call.1} parent=1 // pred_check
      _
    $region35: #{tpu_custom_call.1} parent=1 // pred_check_branch
      %64 = sbr.rel (0) target = $region37
    $region36: #{tpu_custom_call.1} parent=1 // pred_region
      %65 = dma.done [#allocation7], 1024
    $region37: #{tpu_custom_call.1} parent=1 // pred_fallthru
      _
    // Predicated region
    $region38: #{tpu_custom_call.1} parent=1 // pred_check
      _
    $region39: #{tpu_custom_call.1} parent=1 // pred_check_branch
      %67 = sbr.rel (0) target = $region41
    $region40: #{tpu_custom_call.1} parent=1 // pred_region
      %68 = dma.done [#allocation7], 1024
    $region41: #{tpu_custom_call.1} parent=1 // pred_fallthru
      _
    %v70 = vld [vmem:[#allocation3] sm:$0xf]
    %v71 = vld [vmem:[#allocation3 + $0x4] sm:$0xf]
    %v72 = vld [vmem:[#allocation6] sm:$0xf]
    %v73 = vld [vmem:[#allocation6 + $0x4] sm:$0xf]
    %v74 = vld [vmem:[#allocation6 + $0x8] sm:$0xf]
    %v75 = vld [vmem:[#allocation6 + $0xc] sm:$0xf]
    %v76 = vld [vmem:[#allocation6 + $0x10] sm:$0xf]
    %v77 = vld [vmem:[#allocation6 + $0x14] sm:$0xf]
    %v78 = vld [vmem:[#allocation6 + $0x18] sm:$0xf]
    %v79 = vld [vmem:[#allocation6 + $0x1c] sm:$0xf]
    %v80 = vld [vmem:[#allocation6 + $0x20] sm:$0xf]
    %v81 = vld [vmem:[#allocation6 + $0x24] sm:$0xf]
    %v82 = vld [vmem:[#allocation6 + $0x28] sm:$0xf]
    %v83 = vld [vmem:[#allocation6 + $0x2c] sm:$0xf]
    %v84 = vld [vmem:[#allocation6 + $0x30] sm:$0xf]
    %v85 = vld [vmem:[#allocation6 + $0x34] sm:$0xf]
    %v86 = vld [vmem:[#allocation6 + $0x38] sm:$0xf]
    %v87 = vld [vmem:[#allocation6 + $0x3c] sm:$0xf]
    %v88 = vld [vmem:[%s2] sm:$0x1]
    %v90 = vlaneseq
    %v91 = vshrl.u32 %v90, 7
    %v92 = vsub.s32 0, %v91
    %v93 = vrot.slane %v88, %v92
    %v97 = vunpack.c.l.b16 %v70
    %v98 = vunpack.c.l.b16 %v71
    %v99 = vpack.c.b16 %v98, %v97
    %v117 = vunpack.c.l.b16 %v72
    %v118 = vunpack.c.l.b16 %v73
    %v119 = vunpack.c.l.b16 %v74
    %v120 = vunpack.c.l.b16 %v75
    %v121 = vunpack.c.l.b16 %v76
    %v122 = vunpack.c.l.b16 %v77
    %v123 = vunpack.c.l.b16 %v78
    %v124 = vunpack.c.l.b16 %v79
    %v125 = vunpack.c.l.b16 %v80
    %v126 = vunpack.c.l.b16 %v81
    %v127 = vunpack.c.l.b16 %v82
    %v128 = vunpack.c.l.b16 %v83
    %v129 = vunpack.c.l.b16 %v84
    %v130 = vunpack.c.l.b16 %v85
    %v131 = vunpack.c.l.b16 %v86
    %v132 = vunpack.c.l.b16 %v87
    %v133 = vpack.c.b16 %v118, %v117
    %v134 = vpack.c.b16 %v120, %v119
    %v135 = vpack.c.b16 %v122, %v121
    %v136 = vpack.c.b16 %v124, %v123
    %v137 = vpack.c.b16 %v126, %v125
    %v138 = vpack.c.b16 %v128, %v127
    %v139 = vpack.c.b16 %v130, %v129
    %v140 = vpack.c.b16 %v132, %v131
    %149 = vmatprep.subr.bf16.mxu0 0
    %150 = vmatpush1.bf16.msra.mxu0 %v133
    %151 = vmatprep.subr.bf16.mxu0 0
    %152 = vmatpush1.bf16.msra.mxu0 %v134
    %153 = vmatprep.subr.bf16.mxu0 0
    %154 = vmatpush1.bf16.msra.mxu0 %v135
    %155 = vmatprep.subr.bf16.mxu0 0
    %156 = vmatpush1.bf16.msra.mxu0 %v136
    %157 = vmatprep.subr.bf16.mxu0 0
    %158 = vmatpush1.bf16.msra.mxu0 %v137
    %159 = vmatprep.subr.bf16.mxu0 0
    %160 = vmatpush1.bf16.msra.mxu0 %v138
    %161 = vmatprep.subr.bf16.mxu0 0
    %162 = vmatpush1.bf16.msra.mxu0 %v139
    %163 = vmatprep.subr.bf16.mxu0 0
    %164 = vmatpush1.bf16.msra.mxu0 %v140
    %165 = vmatprep.subr.bf16.mxu0 0
    %166 = vmatpush1.bf16.msra.mxu0 0
    %167 = vmatprep.subr.bf16.mxu0 0
    %168 = vmatpush1.bf16.msra.mxu0 0
    %169 = vmatprep.subr.bf16.mxu0 0
    %170 = vmatpush1.bf16.msra.mxu0 0
    %171 = vmatprep.subr.bf16.mxu0 0
    %172 = vmatpush1.bf16.msra.mxu0 0
    %173 = vmatprep.subr.bf16.mxu0 0
    %174 = vmatpush1.bf16.msra.mxu0 0
    %175 = vmatprep.subr.bf16.mxu0 0
    %176 = vmatpush1.bf16.msra.mxu0 0
    %177 = vmatprep.subr.bf16.mxu0 0
    %178 = vmatpush1.bf16.msra.mxu0 0
    %179 = vmatprep.subr.bf16.mxu0 0
    %180 = vmatpush1.bf16.msra.mxu0 0
    %181 = vmatprep.mubr.bf16.mxu0 0
    %182 = vmatmul.mubr.bf16.gmra.mrb[0].mxu0 %v99
    %v183 = vpop.f32.mrb[0].mxu0
    %v184 = vadd.f32 %v93, %v183
    %v185 = vpop.f32.mrb[0].mxu0
    %v186 = vpop.f32.mrb[0].mxu0
    %v187 = vadd.f32 %v93, %v186
    %v188 = vpop.f32.mrb[0].mxu0
    %189 = vdwg.mxu0
    %v190 = vmax.f32 %v184, 0.0
    %v191 = vmax.f32 %v187, 0.0
    %v192 = vpack.c.bf16 %v191, %v190
    %v193 = vld [vmem:[#allocation8] sm:$0xf]
    %v194 = vld [vmem:[#allocation8 + $0x4] sm:$0xf]
    %v195 = vld [vmem:[#allocation8 + $0x8] sm:$0xf]
    %v196 = vld [vmem:[#allocation8 + $0xc] sm:$0xf]
    %v197 = vld [vmem:[#allocation8 + $0x10] sm:$0xf]
    %v198 = vld [vmem:[#allocation8 + $0x14] sm:$0xf]
    %v199 = vld [vmem:[#allocation8 + $0x18] sm:$0xf]
    %v200 = vld [vmem:[#allocation8 + $0x1c] sm:$0xf]
    %v201 = vld [vmem:[#allocation8 + $0x20] sm:$0xf]
    %v202 = vld [vmem:[#allocation8 + $0x24] sm:$0xf]
    %v203 = vld [vmem:[#allocation8 + $0x28] sm:$0xf]
    %v204 = vld [vmem:[#allocation8 + $0x2c] sm:$0xf]
    %v205 = vld [vmem:[#allocation8 + $0x30] sm:$0xf]
    %v206 = vld [vmem:[#allocation8 + $0x34] sm:$0xf]
    %v207 = vld [vmem:[#allocation8 + $0x38] sm:$0xf]
    %v208 = vld [vmem:[#allocation8 + $0x3c] sm:$0xf]
    %v209 = vld [vmem:[%s4] sm:$0x1]
    %v211 = vlaneseq
    %v212 = vshrl.u32 %v211, 7
    %v213 = vsub.s32 0, %v212
    %v214 = vrot.slane %v209, %v213
    %v232 = vunpack.c.l.b16 %v193
    %v233 = vunpack.c.l.b16 %v194
    %v234 = vunpack.c.l.b16 %v195
    %v235 = vunpack.c.l.b16 %v196
    %v236 = vunpack.c.l.b16 %v197
    %v237 = vunpack.c.l.b16 %v198
    %v238 = vunpack.c.l.b16 %v199
    %v239 = vunpack.c.l.b16 %v200
    %v240 = vunpack.c.l.b16 %v201
    %v241 = vunpack.c.l.b16 %v202
    %v242 = vunpack.c.l.b16 %v203
    %v243 = vunpack.c.l.b16 %v204
    %v244 = vunpack.c.l.b16 %v205
    %v245 = vunpack.c.l.b16 %v206
    %v246 = vunpack.c.l.b16 %v207
    %v247 = vunpack.c.l.b16 %v208
    %v248 = vpack.c.b16 %v233, %v232
    %v249 = vpack.c.b16 %v235, %v234
    %v250 = vpack.c.b16 %v237, %v236
    %v251 = vpack.c.b16 %v239, %v238
    %v252 = vpack.c.b16 %v241, %v240
    %v253 = vpack.c.b16 %v243, %v242
    %v254 = vpack.c.b16 %v245, %v244
    %v255 = vpack.c.b16 %v247, %v246
    %264 = vmatprep.subr.bf16.mxu0 0
    %265 = vmatpush1.bf16.msra.mxu0 %v248
    %266 = vmatprep.subr.bf16.mxu0 0
    %267 = vmatpush1.bf16.msra.mxu0 %v249
    %268 = vmatprep.subr.bf16.mxu0 0
    %269 = vmatpush1.bf16.msra.mxu0 %v250
    %270 = vmatprep.subr.bf16.mxu0 0
    %271 = vmatpush1.bf16.msra.mxu0 %v251
    %272 = vmatprep.subr.bf16.mxu0 0
    %273 = vmatpush1.bf16.msra.mxu0 %v252
    %274 = vmatprep.subr.bf16.mxu0 0
    %275 = vmatpush1.bf16.msra.mxu0 %v253
    %276 = vmatprep.subr.bf16.mxu0 0
    %277 = vmatpush1.bf16.msra.mxu0 %v254
    %278 = vmatprep.subr.bf16.mxu0 0
    %279 = vmatpush1.bf16.msra.mxu0 %v255
    %280 = vmatprep.subr.bf16.mxu0 0
    %281 = vmatpush1.bf16.msra.mxu0 0
    %282 = vmatprep.subr.bf16.mxu0 0
    %283 = vmatpush1.bf16.msra.mxu0 0
    %284 = vmatprep.subr.bf16.mxu0 0
    %285 = vmatpush1.bf16.msra.mxu0 0
    %286 = vmatprep.subr.bf16.mxu0 0
    %287 = vmatpush1.bf16.msra.mxu0 0
    %288 = vmatprep.subr.bf16.mxu0 0
    %289 = vmatpush1.bf16.msra.mxu0 0
    %290 = vmatprep.subr.bf16.mxu0 0
    %291 = vmatpush1.bf16.msra.mxu0 0
    %292 = vmatprep.subr.bf16.mxu0 0
    %293 = vmatpush1.bf16.msra.mxu0 0
    %294 = vmatprep.subr.bf16.mxu0 0
    %295 = vmatpush1.bf16.msra.mxu0 0
    %296 = vmatprep.mubr.bf16.mxu0 0
    %297 = vmatmul.mubr.bf16.gmra.mrb[0].mxu0 %v192
    %v298 = vpop.f32.mrb[0].mxu0
    %v299 = vadd.f32 %v214, %v298
    %v300 = vpop.f32.mrb[0].mxu0
    %v301 = vpop.f32.mrb[0].mxu0
    %v302 = vadd.f32 %v214, %v301
    %v303 = vpop.f32.mrb[0].mxu0
    %304 = vdwg.mxu0
    %v305 = vmax.f32 %v299, 0.0
    %v306 = vmax.f32 %v302, 0.0
    %v307 = vpack.c.bf16 %v306, %v305
    %v308 = vld [vmem:[%s5] sm:$0xf]
    %s309 = sld [smem:[#allocation2]]
    %v310 = vstv %s309
    %311 = vmatprep.subr.bf16.mxu0 0
    %312 = vmatpush1.bf16.xpose.msra.mxu0 %v307
    %313 = vmatprep.subr.bf16.mxu0 0
    %314 = vmatpush1.bf16.xpose.msra.mxu0 0
    %315 = vmatprep.subr.bf16.mxu0 0
    %316 = vmatpush1.bf16.xpose.msra.mxu0 0
    %317 = vmatprep.subr.bf16.mxu0 0
    %318 = vmatpush1.bf16.xpose.msra.mxu0 0
    %319 = vmatprep.subr.bf16.mxu0 0
    %320 = vmatpush1.bf16.xpose.msra.mxu0 0
    %321 = vmatprep.subr.bf16.mxu0 0
    %322 = vmatpush1.bf16.xpose.msra.mxu0 0
    %323 = vmatprep.subr.bf16.mxu0 0
    %324 = vmatpush1.bf16.xpose.msra.mxu0 0
    %325 = vmatprep.subr.bf16.mxu0 0
    %326 = vmatpush1.bf16.xpose.msra.mxu0 0
    %327 = vmatprep.subr.bf16.mxu0 0
    %328 = vmatpush1.bf16.xpose.msra.mxu0 0
    %329 = vmatprep.subr.bf16.mxu0 0
    %330 = vmatpush1.bf16.xpose.msra.mxu0 0
    %331 = vmatprep.subr.bf16.mxu0 0
    %332 = vmatpush1.bf16.xpose.msra.mxu0 0
    %333 = vmatprep.subr.bf16.mxu0 0
    %334 = vmatpush1.bf16.xpose.msra.mxu0 0
    %335 = vmatprep.subr.bf16.mxu0 0
    %336 = vmatpush1.bf16.xpose.msra.mxu0 0
    %337 = vmatprep.subr.bf16.mxu0 0
    %338 = vmatpush1.bf16.xpose.msra.mxu0 0
    %339 = vmatprep.subr.bf16.mxu0 0
    %340 = vmatpush1.bf16.xpose.msra.mxu0 0
    %341 = vmatprep.subr.bf16.mxu0 0
    %342 = vmatpush1.bf16.xpose.msra.mxu0 0
    %343 = vmatprep.mubr.bf16.mxu0 0
    %344 = vmatmul.mubr.bf16.gmra.mrb[0].mxu0 %v308
    %v345 = vpop.f32.mrb[0].mxu0
    %v346 = vadd.f32 %v310, %v345
    %v347 = vpop.f32.mrb[0].mxu0
    %v348 = vpop.f32.mrb[0].mxu0
    %v349 = vpop.f32.mrb[0].mxu0
    %350 = vdwg.mxu0
    %vm351 = vcmask 130048
    %352 = vst.msk [vmem:[#allocation9] sm:$0xff] %vm351, %v346
    // Predicated region
    $region42: #{tpu_custom_call.1} parent=1 // pred_check
      _
    $region43: #{tpu_custom_call.1} parent=1 // pred_check_branch
      %354 = sbr.rel (0) target = $region45
    $region44: #{tpu_custom_call.1} parent=1 // pred_region
      %s356 = ssub.s32 128, 128
      %357 = vsyncadd [#allocation5], %s356
      %s359 = sshll.u32 [#allocation9], 4
      %s360 = int_to_ptr.vmem [resolvable:$true] %s359
      %362 = dma.vmem_to_hbm [thread:$0]  %s360, 128, %s7, [#allocation5]
    $region45: #{tpu_custom_call.1} parent=1 // pred_fallthru
      _
    // Predicated region
    $region46: #{tpu_custom_call.1} parent=1 // pred_check
      _
    $region47: #{tpu_custom_call.1} parent=1 // pred_check_branch
      %364 = sbr.rel (0) target = $region49
    $region48: #{tpu_custom_call.1} parent=1 // pred_region
      %365 = dma.done [#allocation5], 128
    $region49: #{tpu_custom_call.1} parent=1 // pred_fallthru
      _
    %366 = vsyncpa [#allocation4], 1
    %367 = vsyncpa [#allocation7], 1
    %368 = vsyncpa [#allocation5], 1

</llo_original>
